<compile_context>
chip_gen: v6e
topology: v6e:2x2x1
jax: 0.10.0
libtpu: 0.0.40
codegen_flags: <defaults>
</compile_context>

<pallas_src>
import jax
import jax.numpy as jnp
from jax.experimental import pallas as pl
from jax.experimental.pallas import tpu as pltpu


def _copy_kernel(ctx_ref, out_ref):
    # Pure pass-through of the context features tile.
    out_ref[...] = ctx_ref[...]


def direct_aggregation(node_features: jax.Array, context_features: jax.Array) -> jax.Array:
    """Pallas implementation of DirectAggregation.forward (identity on context_features)."""
    del node_features  # Never read by the module; do not stage it through VMEM.

    n, d = context_features.shape
    dtype_bytes = jnp.dtype(context_features.dtype).itemsize

    # VMEM byte budget for (ctx tile + out tile) * 2 (double buffering).
    # 8 MiB keeps us well inside v7x's 32 MiB scoped default / 64 MiB physical,
    # and inside v5e's 16 MiB scoped default even before raising the limit.
    vmem_budget = 8 * 1024 * 1024

    # Feature (lane) tile: keep full D unless it is huge and 128-aligned, in
    # which case tile it in lane-dense multiples of 128.
    if d % 128 == 0 and d * dtype_bytes > 1 * 1024 * 1024:
        tile_d = 2048  # 2048 * 4B = 8 KiB per row; lane-dense, unmasked stores.
        tile_d = min(tile_d, d)
    else:
        tile_d = d

    # Row (sublane) tile: largest multiple of 8 such that
    #   2 (double-buffer) * 2 (in + out) * tile_n * tile_d * dtype_bytes <= budget.
    max_rows = vmem_budget // (4 * tile_d * dtype_bytes)
    tile_n = max(8, (max_rows // 8) * 8)

    if n % 8 == 0:
        tile_n = min(tile_n, n)
    else:
        # Non-8-aligned row count: fall back to a single full-array block
        # (satisfies the (8,128) rule because the block equals the array dims).
        tile_n = n
        tile_d = d

    grid = (pl.cdiv(n, tile_n), pl.cdiv(d, tile_d))

    return pl.pallas_call(
        _copy_kernel,
        out_shape=jax.ShapeDtypeStruct((n, d), context_features.dtype),
        grid=grid,
        in_specs=[pl.BlockSpec((tile_n, tile_d), lambda i, j: (i, j))],
        out_specs=pl.BlockSpec((tile_n, tile_d), lambda i, j: (i, j)),
        compiler_params=pltpu.CompilerParams(
            dimension_semantics=("parallel", "parallel"),
            # Explicit limit: above v5e's 16 MiB scoped default, well under
            # v7x's 64 MiB physical VMEM.
            vmem_limit_bytes=32 * 1024 * 1024,
        ),
    )(context_features)


if __name__ == "__main__":
    key = jax.random.PRNGKey(0)
    k1, k2 = jax.random.split(key)

    # Small shapes consistent with the module: 8 nodes / 8 contexts, 32-dim features.
    node_features = jax.random.normal(k1, (8, 32), dtype=jnp.float32)
    context_features = jax.random.normal(k2, (8, 32), dtype=jnp.float32)

    out = direct_aggregation(node_features, context_features)
    out = jax.block_until_ready(out)

    # Verify exact pass-through semantics.
    assert out.shape == context_features.shape
    assert out.dtype == context_features.dtype
    assert bool(jnp.array_equal(out, context_features))

    print("KERNEL_OK")
</pallas_src>

<mosaic_0001>
module attributes {stable_mosaic.version = 11 : i64} {
  func.func @_copy_kernel(%arg0: i32, %arg1: i32, %arg2: memref<8x32xf32, #tpu.memory_space<vmem>>, %arg3: memref<8x32xf32, #tpu.memory_space<vmem>>) attributes {dimension_semantics = [#tpu.dimension_semantics<parallel>, #tpu.dimension_semantics<parallel>], iteration_bounds = array<i64: 1, 1>, scalar_prefetch = 0 : i64, scratch_operands = 0 : i64, tpu.core_type = #tpu.core_type<tc>, window_params = [{transform_indices = @transform_0, window_bounds = array<i64: 8, 32>}, {transform_indices = @transform_1, window_bounds = array<i64: 8, 32>}]} {
    %c0 = arith.constant 0 : index
    %c0_0 = arith.constant 0 : index
    %0 = vector.load %arg2[%c0, %c0_0] : memref<8x32xf32, #tpu.memory_space<vmem>>, vector<8x32xf32>
    %c0_1 = arith.constant 0 : index
    %c0_2 = arith.constant 0 : index
    %1 = vector.load %arg3[%c0_1, %c0_2] : memref<8x32xf32, #tpu.memory_space<vmem>>, vector<8x32xf32>
    tpu.vector_store %arg3[%c0_1, %c0_2], %0 {strides = array<i32>} : memref<8x32xf32, #tpu.memory_space<vmem>>, vector<8x32xf32>,
    return
  }
  func.func @transform_0(%arg0: i32, %arg1: i32) -> (i32, i32) {
    %c0_i32 = arith.constant 0 : i32
    return %arg0, %arg1 : i32, i32
  }
  func.func @transform_1(%arg0: i32, %arg1: i32) -> (i32, i32) {
    %c0_i32 = arith.constant 0 : i32
    return %arg0, %arg1 : i32, i32
  }
}

</mosaic_0001>

<llo_original>
// kernel: tpu_custom_call.1
$region0: #{tpu_custom_call.1}
  #allocation0 [shape = 'u32[]', space=smem, size = 0x4, offset = 0x4, fixed_abs, tag = 'smem constant byte address 0x4 - core index']
  #allocation1 [shape = 'u32[144,128]{1,0:T(1,128)}', space=vmem, size = 0x12000, scoped, tag = 'internal scratch']
  %s0 = inlined_call_operand.hbm [shape: f32[8,32], index: 0, kind: input, shape index: {}]
  %s1 = inlined_call_operand.hbm [shape: f32[8,32], index: 1, kind: output, shape index: {}]
  %s2 = sld [smem:[#allocation0]]
  $region18: #{tpu_custom_call.1} parent=0
    _
  %s4 = ssub.s32 1, %s2
  %s5 = scalar_select 0, %s4, %s2
  $region1: #{tpu_custom_call.1} parent=0
    #allocation2 [shape = 'u8[4096]{0}', space=vmem, size = 0x1000, scoped, tag = 'input window, operand 0, single buffered']
    #allocation3 [shape = 's32[1]{0}', space=sflag, size = 0x4, scoped, tag = 'scoped memory for tpu_custom_call.1']
    #allocation4 [shape = 's32[1]{0}', space=sflag, size = 0x4, scoped, tag = 'scoped memory for tpu_custom_call.1']
    #allocation5 [shape = 'u8[4096]{0}', space=vmem, size = 0x1000, scoped, tag = 'output window, operand 0, single buffered']
    %6 = vsyncpa [#allocation3], 0
    %7 = vsyncpa [#allocation4], 0
    // Predicated region
    $region2: #{tpu_custom_call.1} parent=1 // pred_check
      _
    $region3: #{tpu_custom_call.1} parent=1 // pred_check_branch
      %9 = sbr.rel (0) target = $region5
    $region4: #{tpu_custom_call.1} parent=1 // pred_region
      %s11 = ssub.s32 128, 128
      %12 = vsyncadd [#allocation3], %s11
      %s14 = sshll.u32 [#allocation2], 4
      %s15 = int_to_ptr.vmem [resolvable:$true] %s14
      %17 = dma.hbm_to_vmem [thread:$0]  %s0, 128, %s15, [#allocation3]
    $region5: #{tpu_custom_call.1} parent=1 // pred_fallthru
      _
    // Predicated region
    $region6: #{tpu_custom_call.1} parent=1 // pred_check
      _
    $region7: #{tpu_custom_call.1} parent=1 // pred_check_branch
      %19 = sbr.rel (0) target = $region9
    $region8: #{tpu_custom_call.1} parent=1 // pred_region
      %20 = dma.done [#allocation3], 128
    $region9: #{tpu_custom_call.1} parent=1 // pred_fallthru
      _
    %v21 = vld [vmem:[#allocation2] sm:$0xff]
    %vm22 = vcmask 261120
    %23 = vst.msk [vmem:[#allocation5] sm:$0xff] %vm22, %v21
    // Predicated region
    $region10: #{tpu_custom_call.1} parent=1 // pred_check
      _
    $region11: #{tpu_custom_call.1} parent=1 // pred_check_branch
      %25 = sbr.rel (0) target = $region13
    $region12: #{tpu_custom_call.1} parent=1 // pred_region
      %s27 = ssub.s32 128, 128
      %28 = vsyncadd [#allocation4], %s27
      %s30 = sshll.u32 [#allocation5], 4
      %s31 = int_to_ptr.vmem [resolvable:$true] %s30
      %33 = dma.vmem_to_hbm [thread:$0]  %s31, 128, %s1, [#allocation4]
    $region13: #{tpu_custom_call.1} parent=1 // pred_fallthru
      _
    // Predicated region
    $region14: #{tpu_custom_call.1} parent=1 // pred_check
      _
    $region15: #{tpu_custom_call.1} parent=1 // pred_check_branch
      %35 = sbr.rel (0) target = $region17
    $region16: #{tpu_custom_call.1} parent=1 // pred_region
      %36 = dma.done [#allocation4], 128
    $region17: #{tpu_custom_call.1} parent=1 // pred_fallthru
      _
    %37 = vsyncpa [#allocation3], 1
    %38 = vsyncpa [#allocation4], 1

</llo_original>
